<compile_context>
chip_gen: v7x
topology: tpu7x:2x2x1
jax: 0.10.0
libtpu: 0.0.40
codegen_flags: <defaults>
</compile_context>

<pallas_src>
import functools

import jax
import jax.numpy as jnp
from jax.experimental import pallas as pl
from jax.experimental.pallas import tpu as pltpu


def _rim_kernel(xc_ref, top_ref, bot_ref, o_ref, *, H, TH, has_partial):
    # xc_ref : (1, TH, W)    center row-strip of one image (last strip may be partial)
    # top_ref: (1, HALO, W)  8-row block whose LAST row is the row above the strip
    # bot_ref: (1, HALO, W)  8-row block whose FIRST row is the row below the strip
    # o_ref  : (1, TH, W)    output strip
    i = pl.program_id(1)

    x = xc_ref[0].astype(jnp.float32)                       # (TH, W); single hoisted cast
    w = x.shape[1]
    halo = top_ref.shape[1]

    top_row = top_ref[0][halo - 1:halo, :].astype(jnp.float32)   # (1, W)
    bot_row = bot_ref[0][0:1, :].astype(jnp.float32)             # (1, W)
    # Zero-padding at the true image top/bottom (== F.conv2d zero padding).
    top_row = jnp.where(i > 0, top_row, 0.0)
    bot_row = jnp.where((i + 1) * TH < H, bot_row, 0.0)

    row = jax.lax.broadcasted_iota(jnp.int32, (TH, 1), 0)        # (TH, 1) row indices
    if has_partial:
        # Last strip may extend past H: rows >= H act as zero padding (their own
        # outputs fall out-of-bounds and are dropped by Pallas on the store).
        x = jnp.where(i * TH + row < H, x, 0.0)

    # Vertical 3-row sum: sublane rolls (XLU) + row-index selects for the two
    # strip-boundary rows.  No scratch round-trip, no misaligned VMEM loads.
    above = jnp.where(row == 0, top_row, pltpu.roll(x, 1, axis=0))
    below = jnp.where(row == TH - 1, bot_row, pltpu.roll(x, TH - 1, axis=0))
    vsum = above + x + below                                     # (TH, W)

    # Horizontal 3-sum with zero boundary: lane rolls (XLU) with the wrapped
    # column masked out via a (1, W) iota — no lane-broadcast of boundary cols.
    col = jax.lax.broadcasted_iota(jnp.int32, (1, w), 1)
    left = jnp.where(col == 0, 0.0, pltpu.roll(vsum, 1, axis=1))       # vsum[:, c-1]
    right = jnp.where(col == w - 1, 0.0, pltpu.roll(vsum, w - 1, axis=1))  # vsum[:, c+1]
    box = vsum + left + right                                    # 3x3 box sum

    # rim = 8*center - (sum of 8 neighbors) = 9*center - 3x3 box sum.
    o_ref[0] = (9.0 * x - box).astype(o_ref.dtype)


def _pick_tile_rows(N, H, W, itemsize, target_bytes):
    """Multiple-of-8 strip height targeting ~target_bytes per (rows x W) strip."""
    if H < 8:
        return H
    h8 = (H // 8) * 8
    max_rows = max(8, (target_bytes // max(1, W * itemsize)) // 8 * 8)
    th = min(max_rows, h8)
    # v7x megacore: keep >= 2 independent grid steps for single-image calls.
    if N == 1 and th >= H and H >= 16:
        th = min(th, max(8, ((H + 1) // 2 + 7) // 8 * 8))
    return th


def get_rim(x, *, tile_rows=None, target_bytes=8 * 1024 * 1024):
    """x: [N, 1, H, W] (NCHW, like the PyTorch module). Returns [N, 1, H, W]."""
    N, C, H, W = x.shape
    assert C == 1, "GetRim conv weight has a single input/output channel"

    x3 = x[:, 0]                              # (N, H, W); no padded HBM copy
    itemsize = jnp.dtype(x.dtype).itemsize

    TH = int(tile_rows) if tile_rows is not None else _pick_tile_rows(
        N, H, W, itemsize, target_bytes)
    # Enforce the (8, 128) sublane constraint on the strip height.
    if H < 8:
        TH = H
    else:
        TH = max(8, min((TH // 8) * 8, (H // 8) * 8))

    nt = -(-H // TH)                          # cdiv: partial last strip allowed
    has_partial = (H % TH) != 0

    if H >= 8:
        HALO = 8
        bpt = TH // 8                         # 8-row halo blocks per strip
        nhb = -(-H // 8)                      # number of 8-row halo blocks
        top_idx = lambda n, i: (n, jnp.maximum(i * bpt - 1, 0), 0)
        bot_idx = lambda n, i: (n, jnp.minimum((i + 1) * bpt, nhb - 1), 0)
    else:
        # Single tiny strip: halos are fully masked in-kernel.
        HALO = H
        top_idx = lambda n, i: (n, 0, 0)
        bot_idx = lambda n, i: (n, 0, 0)

    # VMEM budget from actual buffers: double-buffered center in + out, plus
    # two double-buffered 8-row halo blocks, plus compiler headroom.
    needed = (4 * TH + 4 * HALO) * W * itemsize
    vmem_limit = int(min(64 * 1024 * 1024,
                         max(16 * 1024 * 1024, needed + 8 * 1024 * 1024)))

    kernel = functools.partial(_rim_kernel, H=H, TH=TH, has_partial=has_partial)

    out = pl.pallas_call(
        kernel,
        out_shape=jax.ShapeDtypeStruct((N, H, W), x.dtype),
        grid=(N, nt),
        in_specs=[
            pl.BlockSpec((1, TH, W), lambda n, i: (n, i, 0)),   # center strip
            pl.BlockSpec((1, HALO, W), top_idx),                # top halo block
            pl.BlockSpec((1, HALO, W), bot_idx),                # bottom halo block
        ],
        out_specs=pl.BlockSpec((1, TH, W), lambda n, i: (n, i, 0)),
        compiler_params=pltpu.CompilerParams(
            dimension_semantics=("parallel", "parallel"),
            vmem_limit_bytes=vmem_limit,
        ),
    )(x3, x3, x3)

    return out[:, None, :, :]                 # back to NCHW


def _reference(x):
    w = jnp.array([[[[-1., -1., -1.], [-1., 8., -1.], [-1., -1., -1.]]]],
                  dtype=jnp.float32)
    return jax.lax.conv_general_dilated(
        x.astype(jnp.float32), w, window_strides=(1, 1), padding=((1, 1), (1, 1)),
        dimension_numbers=("NCHW", "OIHW", "NCHW"))


if __name__ == "__main__":
    key = jax.random.PRNGKey(0)

    # Small shape consistent with the module (single input channel).
    x = jax.random.normal(key, (2, 1, 16, 16), dtype=jnp.float32)
    y = get_rim(x)
    jax.block_until_ready(y)
    assert y.shape == x.shape
    assert jnp.allclose(y, _reference(x), atol=1e-4), "mismatch vs reference conv"

    # Multi-strip path with a partial last strip (H=72, TH=16), lane-dense W=128:
    # exercises halo blocks, bottom-row masking and the cdiv grid.
    x2 = jax.random.normal(jax.random.PRNGKey(0), (1, 1, 72, 128), dtype=jnp.float32)
    y2 = get_rim(x2, tile_rows=16)
    jax.block_until_ready(y2)
    assert jnp.allclose(y2, _reference(x2), atol=1e-4), "mismatch (partial-strip path)"

    # Auto tiling for a single image: splits into >=2 strips for megacore.
    x3_ = jax.random.normal(jax.random.PRNGKey(1), (1, 1, 64, 128), dtype=jnp.float32)
    y3 = get_rim(x3_)
    jax.block_until_ready(y3)
    assert jnp.allclose(y3, _reference(x3_), atol=1e-4), "mismatch (auto-tiled path)"

    # bf16 I/O (compute stays f32 in-kernel, output cast back to bf16).
    xb = jax.random.normal(jax.random.PRNGKey(2), (1, 1, 16, 128), dtype=jnp.bfloat16)
    yb = get_rim(xb)
    jax.block_until_ready(yb)
    assert jnp.allclose(yb.astype(jnp.float32), _reference(xb), atol=0.5), "mismatch (bf16)"

    print("KERNEL_OK")
</pallas_src>

<mosaic_0001>
module attributes {stable_mosaic.version = 11 : i64} {
  func.func @_rim_kernel(%arg0: i32, %arg1: i32, %arg2: memref<1x16x16xf32, #tpu.memory_space<vmem>>, %arg3: memref<1x8x16xf32, #tpu.memory_space<vmem>>, %arg4: memref<1x8x16xf32, #tpu.memory_space<vmem>>, %arg5: memref<1x16x16xf32, #tpu.memory_space<vmem>>) attributes {dimension_semantics = [#tpu.dimension_semantics<parallel>, #tpu.dimension_semantics<parallel>], iteration_bounds = array<i64: 2, 1>, scalar_prefetch = 0 : i64, scratch_operands = 0 : i64, tpu.core_type = #tpu.core_type<tc>, window_params = [{transform_indices = @transform_0, window_bounds = array<i64: 1, 16, 16>}, {transform_indices = @transform_1, window_bounds = array<i64: 1, 8, 16>}, {transform_indices = @transform_2, window_bounds = array<i64: 1, 8, 16>}, {transform_indices = @transform_3, window_bounds = array<i64: 1, 16, 16>}]} {
    %c0 = arith.constant 0 : index
    %c0_0 = arith.constant 0 : index
    %c0_1 = arith.constant 0 : index
    %0 = vector.load %arg2[%c0, %c0_0, %c0_1] : memref<1x16x16xf32, #tpu.memory_space<vmem>>, vector<1x16x16xf32>
    %1 = vector.shape_cast %0 : vector<1x16x16xf32> to vector<16x16xf32>
    %c0_2 = arith.constant 0 : index
    %c0_3 = arith.constant 0 : index
    %c0_4 = arith.constant 0 : index
    %2 = vector.load %arg3[%c0_2, %c0_3, %c0_4] : memref<1x8x16xf32, #tpu.memory_space<vmem>>, vector<1x8x16xf32>
    %3 = vector.shape_cast %2 : vector<1x8x16xf32> to vector<8x16xf32>
    %4 = vector.extract_strided_slice %3 {offsets = [7, 0], sizes = [1, 16], strides = [1, 1]} : vector<8x16xf32> to vector<1x16xf32>
    %c0_5 = arith.constant 0 : index
    %c0_6 = arith.constant 0 : index
    %c0_7 = arith.constant 0 : index
    %5 = vector.load %arg4[%c0_5, %c0_6, %c0_7] : memref<1x8x16xf32, #tpu.memory_space<vmem>>, vector<1x8x16xf32>
    %6 = vector.shape_cast %5 : vector<1x8x16xf32> to vector<8x16xf32>
    %7 = vector.extract_strided_slice %6 {offsets = [0, 0], sizes = [1, 16], strides = [1, 1]} : vector<8x16xf32> to vector<1x16xf32>
    %c0_i32 = arith.constant 0 : i32
    %8 = arith.cmpi sgt, %arg1, %c0_i32 : i32
    %cst = arith.constant 0.000000e+00 : f32
    %9 = vector.broadcast %cst : f32 to vector<1x16xf32>
    %10 = arith.select %8, %4, %9 : vector<1x16xf32>
    %c1_i32 = arith.constant 1 : i32
    %11 = arith.addi %arg1, %c1_i32 : i32
    %c16_i32 = arith.constant 16 : i32
    %12 = arith.muli %11, %c16_i32 : i32
    %c16_i32_8 = arith.constant 16 : i32
    %13 = arith.cmpi slt, %12, %c16_i32_8 : i32
    %cst_9 = arith.constant 0.000000e+00 : f32
    %14 = vector.broadcast %cst_9 : f32 to vector<1x16xf32>
    %15 = arith.select %13, %7, %14 : vector<1x16xf32>
    %16 = tpu.iota {dimensions = array<i32: 0>} : vector<16x1xi32>
    %c0_i32_10 = arith.constant 0 : i32
    %17 = vector.broadcast %c0_i32_10 : i32 to vector<16x1xi32>
    %18 = arith.cmpi eq, %16, %17 : vector<16x1xi32>
    %c1_i32_11 = arith.constant 1 : i32
    %19 = tpu.dynamic_rotate %1 by %c1_i32_11 dim 0 : vector<16x16xf32>, i32 -> vector<16x16xf32>
    %20 = vector.shape_cast %18 : vector<16x1xi1> to vector<16x1xi1>
    %21 = vector.broadcast %20 : vector<16x1xi1> to vector<16x16xi1>
    %22 = vector.shape_cast %10 : vector<1x16xf32> to vector<1x16xf32>
    %23 = vector.broadcast %22 : vector<1x16xf32> to vector<16x16xf32>
    %24 = arith.select %21, %23, %19 : vector<16x16xi1>, vector<16x16xf32>
    %c15_i32 = arith.constant 15 : i32
    %25 = vector.broadcast %c15_i32 : i32 to vector<16x1xi32>
    %26 = arith.cmpi eq, %16, %25 : vector<16x1xi32>
    %c15_i32_12 = arith.constant 15 : i32
    %27 = tpu.dynamic_rotate %1 by %c15_i32_12 dim 0 : vector<16x16xf32>, i32 -> vector<16x16xf32>
    %28 = vector.shape_cast %26 : vector<16x1xi1> to vector<16x1xi1>
    %29 = vector.broadcast %28 : vector<16x1xi1> to vector<16x16xi1>
    %30 = vector.shape_cast %15 : vector<1x16xf32> to vector<1x16xf32>
    %31 = vector.broadcast %30 : vector<1x16xf32> to vector<16x16xf32>
    %32 = arith.select %29, %31, %27 : vector<16x16xi1>, vector<16x16xf32>
    %33 = arith.addf %24, %1 : vector<16x16xf32>
    %34 = arith.addf %33, %32 : vector<16x16xf32>
    %35 = tpu.iota {dimensions = array<i32: 1>} : vector<1x16xi32>
    %c0_i32_13 = arith.constant 0 : i32
    %36 = vector.broadcast %c0_i32_13 : i32 to vector<1x16xi32>
    %37 = arith.cmpi eq, %35, %36 : vector<1x16xi32>
    %c1_i32_14 = arith.constant 1 : i32
    %38 = tpu.dynamic_rotate %34 by %c1_i32_14 dim 1 : vector<16x16xf32>, i32 -> vector<16x16xf32>
    %cst_15 = arith.constant 0.000000e+00 : f32
    %39 = vector.shape_cast %37 : vector<1x16xi1> to vector<1x16xi1>
    %40 = vector.broadcast %39 : vector<1x16xi1> to vector<16x16xi1>
    %41 = vector.broadcast %cst_15 : f32 to vector<16x16xf32>
    %42 = arith.select %40, %41, %38 : vector<16x16xi1>, vector<16x16xf32>
    %c15_i32_16 = arith.constant 15 : i32
    %43 = vector.broadcast %c15_i32_16 : i32 to vector<1x16xi32>
    %44 = arith.cmpi eq, %35, %43 : vector<1x16xi32>
    %c15_i32_17 = arith.constant 15 : i32
    %45 = tpu.dynamic_rotate %34 by %c15_i32_17 dim 1 : vector<16x16xf32>, i32 -> vector<16x16xf32>
    %cst_18 = arith.constant 0.000000e+00 : f32
    %46 = vector.shape_cast %44 : vector<1x16xi1> to vector<1x16xi1>
    %47 = vector.broadcast %46 : vector<1x16xi1> to vector<16x16xi1>
    %48 = vector.broadcast %cst_18 : f32 to vector<16x16xf32>
    %49 = arith.select %47, %48, %45 : vector<16x16xi1>, vector<16x16xf32>
    %50 = arith.addf %34, %42 : vector<16x16xf32>
    %51 = arith.addf %50, %49 : vector<16x16xf32>
    %cst_19 = arith.constant 9.000000e+00 : f32
    %52 = vector.broadcast %cst_19 : f32 to vector<16x16xf32>
    %53 = arith.mulf %52, %1 : vector<16x16xf32>
    %54 = arith.subf %53, %51 : vector<16x16xf32>
    %c0_20 = arith.constant 0 : index
    %c0_21 = arith.constant 0 : index
    %c0_22 = arith.constant 0 : index
    %55 = vector.load %arg5[%c0_20, %c0_21, %c0_22] : memref<1x16x16xf32, #tpu.memory_space<vmem>>, vector<1x16x16xf32>
    %56 = vector.shape_cast %55 : vector<1x16x16xf32> to vector<16x16xf32>
    %57 = vector.shape_cast %54 : vector<16x16xf32> to vector<1x16x16xf32>
    tpu.vector_store %arg5[%c0_20, %c0_21, %c0_22], %57 {strides = array<i32>} : memref<1x16x16xf32, #tpu.memory_space<vmem>>, vector<1x16x16xf32>,
    return
  }
  func.func @transform_0(%arg0: i32, %arg1: i32) -> (i32, i32, i32) {
    %c0_i32 = arith.constant 0 : i32
    %c0_i32_0 = arith.constant 0 : i32
    return %arg0, %arg1, %c0_i32 : i32, i32, i32
  }
  func.func @transform_1(%arg0: i32, %arg1: i32) -> (i32, i32, i32) {
    %c2_i32 = arith.constant 2 : i32
    %0 = arith.muli %arg1, %c2_i32 : i32
    %c1_i32 = arith.constant 1 : i32
    %1 = arith.subi %0, %c1_i32 : i32
    %c0_i32 = arith.constant 0 : i32
    %2 = arith.maxsi %1, %c0_i32 : i32
    %c0_i32_0 = arith.constant 0 : i32
    %c0_i32_1 = arith.constant 0 : i32
    return %arg0, %2, %c0_i32_0 : i32, i32, i32
  }
  func.func @transform_2(%arg0: i32, %arg1: i32) -> (i32, i32, i32) {
    %c1_i32 = arith.constant 1 : i32
    %0 = arith.addi %arg1, %c1_i32 : i32
    %c2_i32 = arith.constant 2 : i32
    %1 = arith.muli %0, %c2_i32 : i32
    %c1_i32_0 = arith.constant 1 : i32
    %2 = arith.minsi %1, %c1_i32_0 : i32
    %c0_i32 = arith.constant 0 : i32
    %c0_i32_1 = arith.constant 0 : i32
    return %arg0, %2, %c0_i32 : i32, i32, i32
  }
  func.func @transform_3(%arg0: i32, %arg1: i32) -> (i32, i32, i32) {
    %c0_i32 = arith.constant 0 : i32
    %c0_i32_0 = arith.constant 0 : i32
    return %arg0, %arg1, %c0_i32 : i32, i32, i32
  }
}

</mosaic_0001>

<llo_original>
// kernel: tpu_custom_call.1
$region0: #{tpu_custom_call.1}
  #allocation0 [shape = 'u32[]', space=smem, size = 0x4, offset = 0x4, fixed_abs, tag = 'smem constant byte address 0x4 - core index']
  #allocation1 [shape = 'u32[144,128]{1,0:T(1,128)}', space=vmem, size = 0x12000, scoped, tag = 'internal scratch']
  %s0 = inlined_call_operand.hbm [shape: f32[2,16,16], index: 0, kind: input, shape index: {}]
  %s1 = inlined_call_operand.hbm [shape: f32[2,16,16], index: 1, kind: input, shape index: {}]
  %s2 = inlined_call_operand.hbm [shape: f32[2,16,16], index: 2, kind: input, shape index: {}]
  %s3 = inlined_call_operand.hbm [shape: f32[2,16,16], index: 3, kind: output, shape index: {}]
  %s4 = sld [smem:[#allocation0]]
  $region57: #{tpu_custom_call.1} parent=0
    _
  %s6 = ssub.s32 1, %s4
  %s7 = scalar_select 0, %s6, %s4
  $region1: #{tpu_custom_call.1} parent=0
    #allocation2 [shape = 'u8[16384]{0}', space=vmem, size = 0x4000, scoped, tag = 'input window, operand 0']
    #allocation3 [shape = 's32[2]{0}', space=sflag, size = 0x8, scoped, tag = 'scoped memory for tpu_custom_call.1']
    #allocation4 [shape = 's32[2]{0}', space=sflag, size = 0x8, scoped, tag = 'scoped memory for tpu_custom_call.1']
    #allocation5 [shape = 'u8[8192]{0}', space=vmem, size = 0x2000, scoped, tag = 'input window, operand 1']
    #allocation6 [shape = 's32[2]{0}', space=sflag, size = 0x8, scoped, tag = 'scoped memory for tpu_custom_call.1']
    #allocation7 [shape = 'u8[8192]{0}', space=vmem, size = 0x2000, scoped, tag = 'input window, operand 2']
    #allocation8 [shape = 'u8[16384]{0}', space=vmem, size = 0x4000, scoped, tag = 'output window, operand 0']
    %8 = vsyncpa [#allocation3], 0
    %s9 = scalar_lea.sflag [#allocation3], 1
    %10 = vsyncpa %s9, 0
    %11 = vsyncpa [#allocation6], 0
    %s12 = scalar_lea.sflag [#allocation6], 1
    %13 = vsyncpa %s12, 0
    %14 = vsyncpa [#allocation4], 0
    %s15 = scalar_lea.sflag [#allocation4], 1
    %16 = vsyncpa %s15, 0
    loop: start=0, step=1, limit=4
    $region2: #{tpu_custom_call.1} parent=1 // loop_pre_header
      _
    $region3: #{tpu_custom_call.1} parent=1 // loop_header
      %s18 = sphi 0, %s22
      %p19 = scmp.ge.s32.totalorder %s18, 4
      %s25 = sphi 0, %s37
      %s26 = sphi 0, %s33
      %s27 = sphi 0, %s25
      %s28 = sphi 0, %s26
      %s29 = sphi 0, %s27
      %s30 = sphi 0, %s28
      %s42 = sphi 0, %s44
      %s45 = sphi 0, %s42
      %s46 = sphi 0, %s45
      %s62 = sphi 0, %s46
      %s78 = sphi 0, %s80
      %s81 = sphi 0, %s78
      %s82 = sphi 0, %s81
      %s98 = sphi 0, %s82
      %s114 = sphi 0, %s116
      %s117 = sphi 0, %s114
      %s118 = sphi 0, %s117
      %s134 = sphi 0, %s118
      %s142 = sphi 0, %s144
      %s145 = sphi 0, %s142
      %s146 = sphi 0, %s145
      %s162 = sphi 0, %s146
    $region4: #{tpu_custom_call.1} parent=1 // loop_header_branch
      %21 = sbr.rel (%p19) target = $region8
    $region5: #{tpu_custom_call.1} parent=1 // loop_body
      %s23 = ssub.s32 %s18, 1
      %s24 = ssub.s32 %s18, 2
      %s31 = sadd.s32 1, %s26
      %p32 = scmp.ge.s32.totalorder %s31, 1
      %s33 = scalar_select %p32, 0, %s31
      %s34 = sadd.s32 1, %s25
      %s35 = scalar_select %p32, %s34, %s25
      %p36 = scmp.ge.s32.totalorder %s35, 2
      %s37 = scalar_select %p36, 0, %s35
      %s38 = ssub.s32 %s25, %s37
      %s39 = ssub.s32 %s26, %s33
      %s40 = sor.u32 %s38, %s39
      %p41 = scmp.eq.s32.totalorder %s40, 0
      %s43 = sadd.s32 %s42, 1
      %s44 = scalar_select %p41, %s42, %s43
      %p47 = pneg %p41
      %p48 = scmp.eq.s32.totalorder %s18, 1
      %p49 = por %p47, %p48
      %p50 = scmp.ne.s32.totalorder %s42, %s45
      %p51 = scmp.eq.s32.totalorder %s18, 0
      %p52 = por %p50, %p51
      %p53 = scmp.ne.s32.totalorder %s42, %s45
      %p54 = scmp.eq.s32.totalorder %s23, 1
      %p55 = por %p53, %p54
      %p56 = scmp.ne.s32.totalorder %s45, %s46
      %p57 = scmp.eq.s32.totalorder %s23, 0
      %p58 = por %p56, %p57
      %p59 = scmp.ne.s32.totalorder %s45, %s46
      %p60 = scmp.eq.s32.totalorder %s24, 1
      %p61 = por %p59, %p60
      %p63 = scmp.ne.s32.totalorder %s46, %s62
      %p64 = scmp.eq.s32.totalorder %s24, 0
      %p65 = por %p63, %p64
      %s66 = smul.u32 %s26, 2
      %s67 = ssub.s32 %s66, 1
      %p68 = scmp.gt.s32.totalorder %s67, 0
      %s69 = scalar_select %p68, %s67, 0
      %s70 = smul.u32 %s33, 2
      %s71 = ssub.s32 %s70, 1
      %p72 = scmp.gt.s32.totalorder %s71, 0
      %s73 = scalar_select %p72, %s71, 0
      %s74 = ssub.s32 %s25, %s37
      %s75 = ssub.s32 %s69, %s73
      %s76 = sor.u32 %s74, %s75
      %p77 = scmp.eq.s32.totalorder %s76, 0
      %s79 = sadd.s32 %s78, 1
      %s80 = scalar_select %p77, %s78, %s79
      %p83 = pneg %p77
      %p84 = scmp.eq.s32.totalorder %s18, 1
      %p85 = por %p83, %p84
      %p86 = scmp.ne.s32.totalorder %s78, %s81
      %p87 = scmp.eq.s32.totalorder %s18, 0
      %p88 = por %p86, %p87
      %p89 = scmp.ne.s32.totalorder %s78, %s81
      %p90 = scmp.eq.s32.totalorder %s23, 1
      %p91 = por %p89, %p90
      %p92 = scmp.ne.s32.totalorder %s81, %s82
      %p93 = scmp.eq.s32.totalorder %s23, 0
      %p94 = por %p92, %p93
      %p95 = scmp.ne.s32.totalorder %s81, %s82
      %p96 = scmp.eq.s32.totalorder %s24, 1
      %p97 = por %p95, %p96
      %p99 = scmp.ne.s32.totalorder %s82, %s98
      %p100 = scmp.eq.s32.totalorder %s24, 0
      %p101 = por %p99, %p100
      %s102 = sadd.s32 %s26, 1
      %s103 = smul.u32 %s102, 2
      %p104 = scmp.lt.s32.totalorder %s103, 1
      %s105 = scalar_select %p104, %s103, 1
      %s106 = sadd.s32 %s33, 1
      %s107 = smul.u32 %s106, 2
      %p108 = scmp.lt.s32.totalorder %s107, 1
      %s109 = scalar_select %p108, %s107, 1
      %s110 = ssub.s32 %s25, %s37
      %s111 = ssub.s32 %s105, %s109
      %s112 = sor.u32 %s110, %s111
      %p113 = scmp.eq.s32.totalorder %s112, 0
      %s115 = sadd.s32 %s114, 1
      %s116 = scalar_select %p113, %s114, %s115
      %p119 = pneg %p113
      %p120 = scmp.eq.s32.totalorder %s18, 1
      %p121 = por %p119, %p120
      %p122 = scmp.ne.s32.totalorder %s114, %s117
      %p123 = scmp.eq.s32.totalorder %s18, 0
      %p124 = por %p122, %p123
      %p125 = scmp.ne.s32.totalorder %s114, %s117
      %p126 = scmp.eq.s32.totalorder %s23, 1
      %p127 = por %p125, %p126
      %p128 = scmp.ne.s32.totalorder %s117, %s118
      %p129 = scmp.eq.s32.totalorder %s23, 0
      %p130 = por %p128, %p129
      %p131 = scmp.ne.s32.totalorder %s117, %s118
      %p132 = scmp.eq.s32.totalorder %s24, 1
      %p133 = por %p131, %p132
      %p135 = scmp.ne.s32.totalorder %s118, %s134
      %p136 = scmp.eq.s32.totalorder %s24, 0
      %p137 = por %p135, %p136
      %s138 = ssub.s32 %s25, %s37
      %s139 = ssub.s32 %s26, %s33
      %s140 = sor.u32 %s138, %s139
      %p141 = scmp.eq.s32.totalorder %s140, 0
      %s143 = sadd.s32 %s142, 1
      %s144 = scalar_select %p141, %s142, %s143
      %p147 = pneg %p141
      %p148 = scmp.eq.s32.totalorder %s18, 1
      %p149 = por %p147, %p148
      %p150 = scmp.ne.s32.totalorder %s142, %s145
      %p151 = scmp.eq.s32.totalorder %s18, 0
      %p152 = por %p150, %p151
      %p153 = scmp.ne.s32.totalorder %s142, %s145
      %p154 = scmp.eq.s32.totalorder %s23, 1
      %p155 = por %p153, %p154
      %p156 = scmp.ne.s32.totalorder %s145, %s146
      %p157 = scmp.eq.s32.totalorder %s23, 0
      %p158 = por %p156, %p157
      %p159 = scmp.ne.s32.totalorder %s145, %s146
      %p160 = scmp.eq.s32.totalorder %s24, 1
      %p161 = por %p159, %p160
      %p163 = scmp.ne.s32.totalorder %s146, %s162
      %p164 = scmp.eq.s32.totalorder %s24, 0
      %p165 = por %p163, %p164
      %p166 = scmp.le.s32.totalorder 1, %s18
      %p167 = scmp.lt.s32.totalorder %s18, 3
      %p168 = pnand %p166, %p167
      %p169 = pneg %p168
      // Predicated region
      $region9: #{tpu_custom_call.1} parent=5 // pred_check
        _
      $region10: #{tpu_custom_call.1} parent=5 // pred_check_branch
        %171 = sbr.rel (%p168) target = $region12
      $region11: #{tpu_custom_call.1} parent=5 // pred_region
        %s172 = ssub.s32 %s18, 1
      $region12: #{tpu_custom_call.1} parent=5 // pred_fallthru
        _
      %p173 = scmp.lt.s32.totalorder %s18, 2
      // Predicated region
      $region13: #{tpu_custom_call.1} parent=5 // pred_check
        %p174 = pneg %p173
      $region14: #{tpu_custom_call.1} parent=5 // pred_check_branch
        %176 = sbr.rel (%p174) target = $region16
      $region15: #{tpu_custom_call.1} parent=5 // pred_region
        // Predicated region
        $region17: #{tpu_custom_call.1} parent=15 // pred_check
          %p177 = pneg %p52
        $region18: #{tpu_custom_call.1} parent=15 // pred_check_branch
          %179 = sbr.rel (%p177) target = $region20
        $region19: #{tpu_custom_call.1} parent=15 // pred_region
          %s180 = sand.u32 %s42, 1
          %s181 = scalar_lea.sflag [#allocation3], %s180
          %s182 = sand.u32 %s42, 1
          %s183 = smul.addr %s182, 16
          %s184 = scalar_lea.vmem [#allocation2], %s183
          %s185 = smul.u32 2, %s26
          %s187 = ssub.s32 256, 256
          %188 = vsyncadd %s181, %s187
          %s189 = smul.addr %s25, 2
          %s190 = sadd.s32 %s185, %s189
          %s191 = smul.addr %s190, 128
          %s192 = scalar_lea.hbm %s0, %s191
          %s193 = sshll.u32 %s184, 4
          %s194 = int_to_ptr.vmem [resolvable:$true] %s193
          %199 = dma.hbm_to_vmem [thread:$0]  %s192, 256, %s194, %s181, 128, 128, 8
        $region20: #{tpu_custom_call.1} parent=15 // pred_fallthru
          _
        // Predicated region
        $region21: #{tpu_custom_call.1} parent=15 // pred_check
          %p200 = pneg %p88
        $region22: #{tpu_custom_call.1} parent=15 // pred_check_branch
          %202 = sbr.rel (%p200) target = $region24
        $region23: #{tpu_custom_call.1} parent=15 // pred_region
          %s203 = sand.u32 %s18, 1
          %s204 = scalar_lea.sflag [#allocation6], %s203
          %s205 = sand.u32 %s78, 1
          %s206 = smul.addr %s205, 8
          %s207 = scalar_lea.vmem [#allocation5], %s206
          %s208 = smul.u32 %s26, 2
          %s209 = ssub.s32 %s208, 1
          %p210 = scmp.gt.s32.totalorder %s209, 0
          %s211 = scalar_select %p210, %s209, 0
          %s213 = ssub.s32 128, 128
          %214 = vsyncadd %s204, %s213
          %s215 = smul.addr %s25, 2
          %s216 = sadd.s32 %s211, %s215
          %s217 = smul.addr %s216, 128
          %s218 = scalar_lea.hbm %s1, %s217
          %s220 = sshll.u32 %s207, 4
          %s221 = int_to_ptr.vmem [resolvable:$true] %s220
          %223 = dma.hbm_to_vmem [thread:$0]  %s218, 128, %s221, %s204
        $region24: #{tpu_custom_call.1} parent=15 // pred_fallthru
          _
        // Predicated region
        $region25: #{tpu_custom_call.1} parent=15 // pred_check
          %p224 = pneg %p124
        $region26: #{tpu_custom_call.1} parent=15 // pred_check_branch
          %226 = sbr.rel (%p224) target = $region28
        $region27: #{tpu_custom_call.1} parent=15 // pred_region
          %s227 = sand.u32 %s18, 1
          %s228 = scalar_lea.sflag [#allocation6], %s227
          %s229 = sand.u32 %s114, 1
          %s230 = smul.addr %s229, 8
          %s231 = scalar_lea.vmem [#allocation7], %s230
          %s232 = sadd.s32 %s26, 1
          %s233 = smul.u32 %s232, 2
          %p234 = scmp.lt.s32.totalorder %s233, 1
          %s235 = scalar_select %p234, %s233, 1
          %s237 = ssub.s32 128, 128
          %238 = vsyncadd %s228, %s237
          %s239 = smul.addr %s25, 2
          %s240 = sadd.s32 %s235, %s239
          %s241 = smul.addr %s240, 128
          %s242 = scalar_lea.hbm %s2, %s241
          %s244 = sshll.u32 %s231, 4
          %s245 = int_to_ptr.vmem [resolvable:$true] %s244
          %247 = dma.hbm_to_vmem [thread:$0]  %s242, 128, %s245, %s228
        $region28: #{tpu_custom_call.1} parent=15 // pred_fallthru
          _
      $region16: #{tpu_custom_call.1} parent=5 // pred_fallthru
        _
      %p248 = scmp.le.s32.totalorder 1, %s18
      %p249 = scmp.lt.s32.totalorder %s18, 3
      %p250 = pnand %p248, %p249
      %p251 = pneg %p250
      // Predicated region
      $region29: #{tpu_custom_call.1} parent=5 // pred_check
        _
      $region30: #{tpu_custom_call.1} parent=5 // pred_check_branch
        %253 = sbr.rel (%p250) target = $region32
      $region31: #{tpu_custom_call.1} parent=5 // pred_region
        %s254 = ssub.s32 %s18, 1
        %s255 = sand.u32 %s45, 1
        %s256 = scalar_lea.sflag [#allocation3], %s255
        %s257 = sand.u32 %s45, 1
        %s258 = smul.addr %s257, 16
        %s259 = scalar_lea.vmem [#allocation2], %s258
        // Predicated region
        $region33: #{tpu_custom_call.1} parent=31 // pred_check
          %p260 = pneg %p58
        $region34: #{tpu_custom_call.1} parent=31 // pred_check_branch
          %262 = sbr.rel (%p260) target = $region36
        $region35: #{tpu_custom_call.1} parent=31 // pred_region
          %263 = dma.done %s256, 256
        $region36: #{tpu_custom_call.1} parent=31 // pred_fallthru
          _
        %s264 = sand.u32 %s23, 1
        %s265 = scalar_lea.sflag [#allocation6], %s264
        %s266 = sand.u32 %s81, 1
        %s267 = smul.addr %s266, 8
        %s268 = scalar_lea.vmem [#allocation5], %s267
        // Predicated region
        $region37: #{tpu_custom_call.1} parent=31 // pred_check
          %p269 = pneg %p94
        $region38: #{tpu_custom_call.1} parent=31 // pred_check_branch
          %271 = sbr.rel (%p269) target = $region40
        $region39: #{tpu_custom_call.1} parent=31 // pred_region
          %272 = dma.done %s265, 128
        $region40: #{tpu_custom_call.1} parent=31 // pred_fallthru
          _
        %s273 = sand.u32 %s23, 1
        %s274 = scalar_lea.sflag [#allocation6], %s273
        %s275 = sand.u32 %s117, 1
        %s276 = smul.addr %s275, 8
        %s277 = scalar_lea.vmem [#allocation7], %s276
        // Predicated region
        $region41: #{tpu_custom_call.1} parent=31 // pred_check
          %p278 = pneg %p130
        $region42: #{tpu_custom_call.1} parent=31 // pred_check_branch
          %280 = sbr.rel (%p278) target = $region44
        $region43: #{tpu_custom_call.1} parent=31 // pred_region
          %281 = dma.done %s274, 128
        $region44: #{tpu_custom_call.1} parent=31 // pred_fallthru
          _
        %s282 = sand.u32 %s45, 1
        %s283 = scalar_lea.sflag [#allocation3], %s282
        %s284 = sand.u32 %s45, 1
        %s285 = smul.addr %s284, 16
        %s286 = scalar_lea.vmem [#allocation2], %s285
        %p287 = pneg %p58
        %p288 = pneg %p55
        %s289 = sand.u32 %s23, 1
        %s290 = scalar_lea.sflag [#allocation6], %s289
        %s291 = sand.u32 %s81, 1
        %s292 = smul.addr %s291, 8
        %s293 = scalar_lea.vmem [#allocation5], %s292
        %p294 = pneg %p94
        %p295 = pneg %p91
        %s296 = sand.u32 %s23, 1
        %s297 = scalar_lea.sflag [#allocation6], %s296
        %s298 = sand.u32 %s117, 1
        %s299 = smul.addr %s298, 8
        %s300 = scalar_lea.vmem [#allocation7], %s299
        %p301 = pneg %p130
        %p302 = pneg %p127
        %p303 = pneg %p158
        %p304 = pneg %p155
        %s305 = sand.u32 %s145, 1
        %s306 = scalar_lea.sflag [#allocation4], %s305
        %s307 = sand.u32 %s145, 1
        %s308 = smul.addr %s307, 16
        %s309 = scalar_lea.vmem [#allocation8], %s308
        %s310 = smul.u32 2, %s28
        %s311 = smul.u32 %s28, 2
        %s312 = ssub.s32 %s311, 1
        %p313 = scmp.gt.s32.totalorder %s312, 0
        %s314 = scalar_select %p313, %s312, 0
        %s315 = sadd.s32 %s28, 1
        %s316 = smul.u32 %s315, 2
        %p317 = scmp.lt.s32.totalorder %s316, 1
        %s318 = scalar_select %p317, %s316, 1
        %s319 = smul.u32 2, %s28
        %v320 = vld [vmem:[%s259] sm:$0xff]
        %v321 = vld [vmem:[%s259 + $0x8] sm:$0xff]
        %v322 = vld [vmem:[%s268] sm:$0xff]
        %v323 = vld [vmem:[%s277] sm:$0xff]
        %p324 = scmp.gt.s32.totalorder %s28, 0
        %s325 = scalar_select %p324, 1, 0
        %v326 = vstv %s325
        %vm327 = vcmp.eq.s32.totalorder %v326, 1
        %v328 = vsel %vm327, %v322, 0.0
        %s329 = sadd.s32 %s28, 1
        %s330 = smul.u32 %s329, 16
        %p331 = scmp.lt.s32.totalorder %s330, 16
        %s332 = scalar_select %p331, 1, 0
        %v333 = vstv %s332
        %vm334 = vcmp.eq.s32.totalorder %v333, 1
        %v335 = vsel %vm334, %v323, 0.0
        %v336 = vlaneseq
        %v337 = vshrl.u32 %v336, 7
        %v338 = vadd.s32 %v337, 8
        %vm339 = vcmp.eq.s32.totalorder %v337, 0
        %vm340 = vcmp.eq.s32.totalorder %v338, 0
        %v341 = vrot.slane %v320, 7
        %v342 = vrot.slane %v321, 7
        %vm343 = vcmp.lt.s32.totalorder %v337, 1
        %v344 = vsel %vm343, %v341, %v342
        %v345 = vsel %vm343, %v342, %v341
        %v346 = vsel %vm339, 1, 0
        %v347 = vsel %vm340, 1, 0
        %vm348 = vcmp.eq.s32.totalorder %v346, 1
        %vm349 = vcmp.eq.s32.totalorder %v347, 1
        %v350 = vlaneseq
        %v351 = vshrl.u32 %v350, 7
        %v352 = vsub.s32 7, %v351
        %v353 = vrot.slane %v328, %v352
        %v354 = vsel %vm348, %v353, %v345
        %v355 = vsel %vm349, %v353, %v344
        %vm356 = vcmp.eq.s32.totalorder %v337, 15
        %vm357 = vcmp.eq.s32.totalorder %v338, 15
        %v358 = vrot.slane %v320, 1
        %v359 = vrot.slane %v321, 1
        %vm360 = vcmp.lt.s32.totalorder %v337, 7
        %v361 = vsel %vm360, %v358, %v359
        %v362 = vsel %vm360, %v359, %v358
        %v363 = vsel %vm356, 1, 0
        %v364 = vsel %vm357, 1, 0
        %vm365 = vcmp.eq.s32.totalorder %v363, 1
        %vm366 = vcmp.eq.s32.totalorder %v364, 1
        %v367 = vlaneseq
        %v368 = vshrl.u32 %v367, 7
        %v369 = vsub.s32 0, %v368
        %v370 = vrot.slane %v335, %v369
        %v371 = vsel %vm365, %v370, %v361
        %v372 = vsel %vm366, %v370, %v362
        %v373 = vadd.f32 %v354, %v320
        %v374 = vadd.f32 %v355, %v321
        %v375 = vadd.f32 %v373, %v371
        %v376 = vadd.f32 %v374, %v372
        %v377 = vlaneseq
        %v378 = vand.u32 %v377, 127
        %vm379 = vcmp.eq.s32.totalorder %v378, 0
        %vm380 = vcmask 1047680
        %381 = vrot.lane.b32.xlu0 %v375, 16
        %v382 = vpop.permute.xlu0 %381
        %v383 = vsel %vm380, %v382, %v375
        %384 = vrot.lane.b32.xlu0 %v376, 16
        %v385 = vpop.permute.xlu0 %384
        %v386 = vsel %vm380, %v385, %v376
        %387 = vrot.lane.b32.xlu0 %v383, 16
        %v388 = vpop.permute.xlu0 %387
        %389 = vrot.lane.b32.xlu0 %v386, 16
        %v390 = vpop.permute.xlu0 %389
        %v391 = vsel %vm380, %v388, %v375
        %v392 = vsel %vm380, %v390, %v376
        %v393 = vsel %vm379, 1, 0
        %vm394 = vcmp.eq.s32.totalorder %v393, 1
        %397 = vrot.lane.b32.xlu0 %v391, 113
        %v398 = vpop.permute.xlu0 %397
        %399 = vrot.lane.b32.xlu0 %v392, 113
        %v400 = vpop.permute.xlu0 %399
        %v403 = vsel %vm394, 0.0, %v398
        %v404 = vsel %vm394, 0.0, %v400
        %vm405 = vcmp.eq.s32.totalorder %v378, 15
        %v406 = vsel %vm405, 1, 0
        %vm407 = vcmp.eq.s32.totalorder %v406, 1
        %408 = vrot.lane.b32.xlu0 %v391, 127
        %v409 = vpop.permute.xlu0 %408
        %410 = vrot.lane.b32.xlu0 %v392, 127
        %v411 = vpop.permute.xlu0 %410
        %v414 = vsel %vm407, 0.0, %v409
        %v415 = vsel %vm407, 0.0, %v411
        %v416 = vadd.f32 %v375, %v403
        %v417 = vadd.f32 %v376, %v404
        %v418 = vadd.f32 %v416, %v414
        %v419 = vadd.f32 %v417, %v415
        %v420 = vmul.f32 %v320, 9.0
        %v421 = vmul.f32 %v321, 9.0
        %v422 = vsub.f32 %v420, %v418
        %v423 = vsub.f32 %v421, %v419
        %vm424 = vcmask 130048
        %425 = vst.msk [vmem:[%s309] sm:$0xff] %vm424, %v422
        %426 = vst.msk [vmem:[%s309 + $0x8] sm:$0xff] %vm424, %v423
        %s427 = sand.u32 %s145, 1
        %s428 = scalar_lea.sflag [#allocation4], %s427
        %s429 = sand.u32 %s145, 1
        %s430 = smul.addr %s429, 16
        %s431 = scalar_lea.vmem [#allocation8], %s430
        // Predicated region
        $region45: #{tpu_custom_call.1} parent=31 // pred_check
          %p432 = pneg %p155
        $region46: #{tpu_custom_call.1} parent=31 // pred_check_branch
          %434 = sbr.rel (%p432) target = $region48
        $region47: #{tpu_custom_call.1} parent=31 // pred_region
          %s435 = smul.u32 2, %s28
          %s437 = ssub.s32 256, 256
          %438 = vsyncadd %s428, %s437
          %s439 = smul.addr %s27, 2
          %s440 = sadd.s32 %s435, %s439
          %s441 = smul.addr %s440, 128
          %s442 = scalar_lea.hbm %s3, %s441
          %s443 = sshll.u32 %s431, 4
          %s444 = int_to_ptr.vmem [resolvable:$true] %s443
          %449 = dma.vmem_to_hbm [thread:$0]  %s444, 256, %s442, %s428, 128, 128, 8
        $region48: #{tpu_custom_call.1} parent=31 // pred_fallthru
          _
      $region32: #{tpu_custom_call.1} parent=5 // pred_fallthru
        _
      %p450 = scmp.le.s32.totalorder 2, %s18
      // Predicated region
      $region49: #{tpu_custom_call.1} parent=5 // pred_check
        %p451 = pneg %p450
      $region50: #{tpu_custom_call.1} parent=5 // pred_check_branch
        %453 = sbr.rel (%p451) target = $region52
      $region51: #{tpu_custom_call.1} parent=5 // pred_region
        %s454 = ssub.s32 %s18, 2
        // Predicated region
        $region53: #{tpu_custom_call.1} parent=51 // pred_check
          %p455 = pneg %p161
        $region54: #{tpu_custom_call.1} parent=51 // pred_check_branch
          %457 = sbr.rel (%p455) target = $region56
        $region55: #{tpu_custom_call.1} parent=51 // pred_region
          %s458 = sand.u32 %s146, 1
          %s459 = scalar_lea.sflag [#allocation4], %s458
          %s460 = sand.u32 %s146, 1
          %s461 = smul.addr %s460, 16
          %s462 = scalar_lea.vmem [#allocation8], %s461
          %463 = dma.done %s459, 256
        $region56: #{tpu_custom_call.1} parent=51 // pred_fallthru
          _
      $region52: #{tpu_custom_call.1} parent=5 // pred_fallthru
        _
    $region6: #{tpu_custom_call.1} parent=1 // loop_footer
      %s22 = sadd.s32 1, %s18
    $region7: #{tpu_custom_call.1} parent=1 // loop_footer_branch
      %17 = sbr.rel target = $region3
    $region8: #{tpu_custom_call.1} parent=1 // loop_exit
      _
    %464 = vsyncpa [#allocation3], 1
    %s465 = scalar_lea.sflag [#allocation3], 1
    %466 = vsyncpa %s465, 1
    %467 = vsyncpa [#allocation6], 1
    %s468 = scalar_lea.sflag [#allocation6], 1
    %469 = vsyncpa %s468, 1
    %470 = vsyncpa [#allocation4], 1
    %s471 = scalar_lea.sflag [#allocation4], 1
    %472 = vsyncpa %s471, 1

</llo_original>
